<compile_context>
chip_gen: v6e
topology: v6e:2x2x1
jax: 0.10.0
libtpu: 0.0.40
codegen_flags: <defaults>
</compile_context>

<pallas_src>
import functools

import jax
import jax.numpy as jnp
from jax.experimental import pallas as pl
from jax.experimental.pallas import tpu as pltpu

LANE = 128      # vreg lane width (last dim)
SUBLANE = 8     # vreg sublane width (second-to-last dim)


def _round_up(n, m):
    return ((n + m - 1) // m) * m


def _pad2(x, rows, cols):
    """Zero-pad a 2-D array up to [rows, cols]."""
    r, c = x.shape
    return jnp.pad(x, ((0, rows - r), (0, cols - c)))


def _fused_rnet_kernel(xu_ref, wu_ref, bu_ref, xi_ref, wi_ref, bi_ref, o_ref, *, hp):
    """Fused user+item path: row-wise L2 normalize (eps=1e-6), x @ W + b, ReLU.

    Writes user result to o_ref[:, :hp] and item result to o_ref[:, hp:]
    (single lane-dense output slab).
    """
    def _norm_mlp(x_ref, w_ref, b_ref):
        x = x_ref[...].astype(jnp.float32)
        # torch.norm(p=2, dim=-1, keepdim=True); zero-padded lanes contribute 0.
        norm = jnp.sqrt(jnp.sum(x * x, axis=-1, keepdims=True))
        # x / (norm + eps)  ->  x * reciprocal(norm + eps)  (EUP vrcp slot).
        inv = pl.reciprocal(norm + 1e-6, approx=True)
        x_n = x * inv
        h = jnp.dot(x_n, w_ref[...], preferred_element_type=jnp.float32) + b_ref[...]
        return jnp.maximum(h, 0.0)

    o_ref[:, :hp] = _norm_mlp(xu_ref, wu_ref, bu_ref)
    o_ref[:, hp:] = _norm_mlp(xi_ref, wi_ref, bi_ref)


def rnet_fused_mlp(user_x, item_x, user_w, user_b, item_w, item_b):
    """user_x: [B, Du], item_x: [B, Di]; weights [D*, H], biases [1, H].

    Returns (user_latent [B, H], item_latent [B, H]) in float32.
    """
    B, Du = user_x.shape
    Di = item_x.shape[1]
    H = user_w.shape[1]

    Bp = _round_up(B, SUBLANE)
    Dp = _round_up(max(Du, Di), LANE)   # common padded K for both matmuls
    Hp = _round_up(H, LANE)             # lane-dense output columns

    xu = _pad2(user_x.astype(jnp.float32), Bp, Dp)
    xi = _pad2(item_x.astype(jnp.float32), Bp, Dp)
    wu = _pad2(user_w.astype(jnp.float32), Dp, Hp)
    wi = _pad2(item_w.astype(jnp.float32), Dp, Hp)
    bu = _pad2(user_b.astype(jnp.float32), 1, Hp)
    bi = _pad2(item_b.astype(jnp.float32), 1, Hp)

    vmem = pltpu.MemorySpace.VMEM
    out = pl.pallas_call(
        functools.partial(_fused_rnet_kernel, hp=Hp),
        out_shape=jax.ShapeDtypeStruct((Bp, 2 * Hp), jnp.float32),
        # Single grid point, full-array blocks (block == full array dims).
        in_specs=[
            pl.BlockSpec((Bp, Dp), lambda: (0, 0), memory_space=vmem),
            pl.BlockSpec((Dp, Hp), lambda: (0, 0), memory_space=vmem),
            pl.BlockSpec((1, Hp), lambda: (0, 0), memory_space=vmem),
            pl.BlockSpec((Bp, Dp), lambda: (0, 0), memory_space=vmem),
            pl.BlockSpec((Dp, Hp), lambda: (0, 0), memory_space=vmem),
            pl.BlockSpec((1, Hp), lambda: (0, 0), memory_space=vmem),
        ],
        out_specs=pl.BlockSpec((Bp, 2 * Hp), lambda: (0, 0), memory_space=vmem),
        compiler_params=pltpu.CompilerParams(vmem_limit_bytes=32 * 1024 * 1024),
    )(xu, wu, bu, xi, wi, bi)

    user_latent = out[:B, :H]
    item_latent = out[:B, Hp:Hp + H]
    return user_latent, item_latent


def linear_init(key, fan_in, fan_out):
    """Deterministic stand-in for nn.Linear default init: U(-1/sqrt(fan_in), +1/sqrt(fan_in))."""
    kw, kb = jax.random.split(key)
    bound = 1.0 / jnp.sqrt(jnp.float32(fan_in))
    w = jax.random.uniform(kw, (fan_in, fan_out), jnp.float32, -bound, bound)
    b = jax.random.uniform(kb, (1, fan_out), jnp.float32, -bound, bound)
    return w, b


@jax.jit
def rnet_forward(ratings_matrix, batch_uid, batch_iid, user_w, user_b, item_w, item_b):
    """Mirrors RNet.forward:
       user_ratings = normalize(R[batch_uid, :])    -> user MLP(num_items -> h1)
       item_ratings = normalize(R[:, batch_iid].T)  -> item MLP(num_users -> h1)
    """
    ratings = ratings_matrix.astype(jnp.float32)
    # Column gather + transpose == row gather on the (one-time) transposed matrix:
    # R[:, batch_iid].T  ==  R.T[batch_iid, :]   (contiguous row DMAs, no strided gather).
    ratings_t = ratings.T
    user_ratings = jnp.take(ratings, batch_uid, axis=0)    # [B, num_items]
    item_ratings = jnp.take(ratings_t, batch_iid, axis=0)  # [B, num_users]
    return rnet_fused_mlp(user_ratings, item_ratings, user_w, user_b, item_w, item_b)


if __name__ == "__main__":
    num_users, num_items, h1, batch = 64, 48, 32, 8

    key = jax.random.PRNGKey(0)
    k_rat, k_mask, k_uid, k_iid, k_umlp, k_imlp = jax.random.split(key, 6)

    # Synthetic rating matrix (stands in for to_rating_matrix's pickle load):
    # ratings in {0} U [1, 5], ~25% density, deterministic.
    raw = jax.random.uniform(k_rat, (num_users, num_items), jnp.float32, 1.0, 5.0)
    mask = (jax.random.uniform(k_mask, (num_users, num_items)) < 0.25).astype(jnp.float32)
    ratings_matrix = raw * mask

    batch_uid = jax.random.randint(k_uid, (batch,), 0, num_users)
    batch_iid = jax.random.randint(k_iid, (batch,), 0, num_items)

    # MLP params: user MLP (num_items -> h1), item MLP (num_users -> h1).
    user_w, user_b = linear_init(k_umlp, num_items, h1)
    item_w, item_b = linear_init(k_imlp, num_users, h1)

    user_latent, item_latent = rnet_forward(
        ratings_matrix, batch_uid, batch_iid, user_w, user_b, item_w, item_b
    )
    jax.block_until_ready((user_latent, item_latent))

    assert user_latent.shape == (batch, h1)
    assert item_latent.shape == (batch, h1)
    print("KERNEL_OK")
</pallas_src>

<mosaic_0001>
module attributes {stable_mosaic.version = 11 : i64} {
  func.func @_fused_rnet_kernel(%arg0: memref<8x128xf32, #tpu.memory_space<vmem>>, %arg1: memref<128x128xf32, #tpu.memory_space<vmem>>, %arg2: memref<1x128xf32, #tpu.memory_space<vmem>>, %arg3: memref<8x128xf32, #tpu.memory_space<vmem>>, %arg4: memref<128x128xf32, #tpu.memory_space<vmem>>, %arg5: memref<1x128xf32, #tpu.memory_space<vmem>>, %arg6: memref<8x256xf32, #tpu.memory_space<vmem>>) attributes {dimension_semantics = [], scalar_prefetch = 0 : i64, scratch_operands = 0 : i64, tpu.core_type = #tpu.core_type<tc>} {
    %c0 = arith.constant 0 : index
    %c0_0 = arith.constant 0 : index
    %0 = vector.load %arg0[%c0, %c0_0] : memref<8x128xf32, #tpu.memory_space<vmem>>, vector<8x128xf32>
    %1 = arith.mulf %0, %0 : vector<8x128xf32>
    %cst = arith.constant dense<0.000000e+00> : vector<8xf32>
    %2 = vector.multi_reduction <add>, %1, %cst [1] : vector<8x128xf32> to vector<8xf32>
    %3 = vector.shape_cast %2 : vector<8xf32> to vector<8x1xf32>
    %4 = math.sqrt %3 : vector<8x1xf32>
    %cst_1 = arith.constant 9.99999997E-7 : f32
    %5 = vector.broadcast %cst_1 : f32 to vector<8x1xf32>
    %6 = arith.addf %4, %5 : vector<8x1xf32>
    %7 = tpu.reciprocal %6 {approx = true} : vector<8x1xf32> -> vector<8x1xf32>
    %8 = vector.broadcast %7 : vector<8x1xf32> to vector<8x128xf32>
    %9 = arith.mulf %0, %8 : vector<8x128xf32>
    %c0_2 = arith.constant 0 : index
    %c0_3 = arith.constant 0 : index
    %10 = vector.load %arg1[%c0_2, %c0_3] : memref<128x128xf32, #tpu.memory_space<vmem>>, vector<128x128xf32>
    %cst_4 = arith.constant dense<0.000000e+00> : vector<8x128xf32>
    %11 = tpu.matmul %9, %10, %cst_4 {dimension_numbers = #tpu.dot_dimension_numbers<[1], [0], [0], [1], [0, 0, 1, 1], [], []>} : vector<8x128xf32>, vector<128x128xf32>, vector<8x128xf32> -> vector<8x128xf32>
    %c0_5 = arith.constant 0 : index
    %c0_6 = arith.constant 0 : index
    %12 = vector.load %arg2[%c0_5, %c0_6] : memref<1x128xf32, #tpu.memory_space<vmem>>, vector<1x128xf32>
    %13 = vector.broadcast %12 : vector<1x128xf32> to vector<8x128xf32>
    %14 = arith.addf %11, %13 : vector<8x128xf32>
    %cst_7 = arith.constant 0.000000e+00 : f32
    %15 = vector.broadcast %cst_7 : f32 to vector<8x128xf32>
    %16 = arith.maximumf %14, %15 : vector<8x128xf32>
    %c0_8 = arith.constant 0 : index
    %c0_9 = arith.constant 0 : index
    %17 = vector.load %arg6[%c0_8, %c0_9] : memref<8x256xf32, #tpu.memory_space<vmem>>, vector<8x128xf32>
    tpu.vector_store %arg6[%c0_8, %c0_9], %16 {strides = array<i32>} : memref<8x256xf32, #tpu.memory_space<vmem>>, vector<8x128xf32>,
    %c0_10 = arith.constant 0 : index
    %c0_11 = arith.constant 0 : index
    %18 = vector.load %arg3[%c0_10, %c0_11] : memref<8x128xf32, #tpu.memory_space<vmem>>, vector<8x128xf32>
    %19 = arith.mulf %18, %18 : vector<8x128xf32>
    %cst_12 = arith.constant dense<0.000000e+00> : vector<8xf32>
    %20 = vector.multi_reduction <add>, %19, %cst_12 [1] : vector<8x128xf32> to vector<8xf32>
    %21 = vector.shape_cast %20 : vector<8xf32> to vector<8x1xf32>
    %22 = math.sqrt %21 : vector<8x1xf32>
    %cst_13 = arith.constant 9.99999997E-7 : f32
    %23 = vector.broadcast %cst_13 : f32 to vector<8x1xf32>
    %24 = arith.addf %22, %23 : vector<8x1xf32>
    %25 = tpu.reciprocal %24 {approx = true} : vector<8x1xf32> -> vector<8x1xf32>
    %26 = vector.broadcast %25 : vector<8x1xf32> to vector<8x128xf32>
    %27 = arith.mulf %18, %26 : vector<8x128xf32>
    %c0_14 = arith.constant 0 : index
    %c0_15 = arith.constant 0 : index
    %28 = vector.load %arg4[%c0_14, %c0_15] : memref<128x128xf32, #tpu.memory_space<vmem>>, vector<128x128xf32>
    %cst_16 = arith.constant dense<0.000000e+00> : vector<8x128xf32>
    %29 = tpu.matmul %27, %28, %cst_16 {dimension_numbers = #tpu.dot_dimension_numbers<[1], [0], [0], [1], [0, 0, 1, 1], [], []>} : vector<8x128xf32>, vector<128x128xf32>, vector<8x128xf32> -> vector<8x128xf32>
    %c0_17 = arith.constant 0 : index
    %c0_18 = arith.constant 0 : index
    %30 = vector.load %arg5[%c0_17, %c0_18] : memref<1x128xf32, #tpu.memory_space<vmem>>, vector<1x128xf32>
    %31 = vector.broadcast %30 : vector<1x128xf32> to vector<8x128xf32>
    %32 = arith.addf %29, %31 : vector<8x128xf32>
    %cst_19 = arith.constant 0.000000e+00 : f32
    %33 = vector.broadcast %cst_19 : f32 to vector<8x128xf32>
    %34 = arith.maximumf %32, %33 : vector<8x128xf32>
    %c0_20 = arith.constant 0 : index
    %c128 = arith.constant 128 : index
    %35 = vector.load %arg6[%c0_20, %c128] : memref<8x256xf32, #tpu.memory_space<vmem>>, vector<8x128xf32>
    tpu.vector_store %arg6[%c0_20, %c128], %34 {strides = array<i32>} : memref<8x256xf32, #tpu.memory_space<vmem>>, vector<8x128xf32>,
    return
  }
}

</mosaic_0001>

<llo_original>
// kernel: rnet_forward.1
$region0: #{rnet_forward.1}
  #allocation0 [shape = 'u32[]', space=smem, size = 0x4, offset = 0x4, fixed_abs, tag = 'smem constant byte address 0x4 - core index']
  #allocation1 [shape = 'u32[144,128]{1,0:T(1,128)}', space=vmem, size = 0x12000, scoped, tag = 'internal scratch']
  %s0 = inlined_call_operand.vmem [shape: f32[8,128], index: 0, kind: input, shape index: {}]
  %s1 = inlined_call_operand.vmem [shape: f32[128,128], index: 1, kind: input, shape index: {}]
  %s2 = inlined_call_operand.vmem [shape: f32[1,128], index: 2, kind: input, shape index: {}]
  %s3 = inlined_call_operand.vmem [shape: f32[8,128], index: 3, kind: input, shape index: {}]
  %s4 = inlined_call_operand.vmem [shape: f32[128,128], index: 4, kind: input, shape index: {}]
  %s5 = inlined_call_operand.vmem [shape: f32[1,128], index: 5, kind: input, shape index: {}]
  %s6 = inlined_call_operand.vmem [shape: f32[8,256], index: 6, kind: output, shape index: {}]
  %s7 = sld [smem:[#allocation0]]
  $region34: #{rnet_forward.1} parent=0
    _
  %s9 = ssub.s32 1, %s7
  %s10 = scalar_select 0, %s9, %s7
  // Predicated region
  $region2: #{rnet_forward.1} parent=0 // pred_check
    _
  $region3: #{rnet_forward.1} parent=0 // pred_check_branch
    %12 = sbr.rel (0) target = $region5
  $region4: #{rnet_forward.1} parent=0 // pred_region
    _
  $region5: #{rnet_forward.1} parent=0 // pred_fallthru
    _
  // Predicated region
  $region6: #{rnet_forward.1} parent=0 // pred_check
    _
  $region7: #{rnet_forward.1} parent=0 // pred_check_branch
    %14 = sbr.rel (0) target = $region9
  $region8: #{rnet_forward.1} parent=0 // pred_region
    _
  $region9: #{rnet_forward.1} parent=0 // pred_fallthru
    _
  // Predicated region
  $region10: #{rnet_forward.1} parent=0 // pred_check
    _
  $region11: #{rnet_forward.1} parent=0 // pred_check_branch
    %16 = sbr.rel (0) target = $region13
  $region12: #{rnet_forward.1} parent=0 // pred_region
    _
  $region13: #{rnet_forward.1} parent=0 // pred_fallthru
    _
  // Predicated region
  $region14: #{rnet_forward.1} parent=0 // pred_check
    _
  $region15: #{rnet_forward.1} parent=0 // pred_check_branch
    %18 = sbr.rel (0) target = $region17
  $region16: #{rnet_forward.1} parent=0 // pred_region
    _
  $region17: #{rnet_forward.1} parent=0 // pred_fallthru
    _
  // Predicated region
  $region18: #{rnet_forward.1} parent=0 // pred_check
    _
  $region19: #{rnet_forward.1} parent=0 // pred_check_branch
    %20 = sbr.rel (0) target = $region21
  $region20: #{rnet_forward.1} parent=0 // pred_region
    _
  $region21: #{rnet_forward.1} parent=0 // pred_fallthru
    _
  // Predicated region
  $region22: #{rnet_forward.1} parent=0 // pred_check
    _
  $region23: #{rnet_forward.1} parent=0 // pred_check_branch
    %22 = sbr.rel (0) target = $region25
  $region24: #{rnet_forward.1} parent=0 // pred_region
    _
  $region25: #{rnet_forward.1} parent=0 // pred_fallthru
    _
  %v23 = vld [vmem:[%s0] sm:$0xff]
  %v24 = vmul.f32 %v23, %v23
  %25 = vadd.xlane.f32.xlu0 %v24
  %v26 = vpop.xlane.xlu0 %25
  %v27 = vrsqrt.pop %v26
  %v28 = vmul.f32 %v26, %v27
  %vm29 = vcmp.eq.f32.partialorder %v26, inf
  %v30 = vsel %vm29, %v26, %v28
  %vm31 = vcmp.eq.f32.partialorder %v26, 0.0
  %v32 = vand.u32 %v26, 2147483648
  %v33 = vsel %vm31, %v32, %v30
  %v34 = vadd.f32 %v33, 1e-06
  %v35 = vrcp.pop %v34
  %v36 = vmul.f32 %v23, %v35
  %v37 = vld [vmem:[%s1] sm:$0xff]
  %v38 = vld [vmem:[%s1 + $0x8] sm:$0xff]
  %v39 = vld [vmem:[%s1 + $0x10] sm:$0xff]
  %v40 = vld [vmem:[%s1 + $0x18] sm:$0xff]
  %v41 = vld [vmem:[%s1 + $0x20] sm:$0xff]
  %v42 = vld [vmem:[%s1 + $0x28] sm:$0xff]
  %v43 = vld [vmem:[%s1 + $0x30] sm:$0xff]
  %v44 = vld [vmem:[%s1 + $0x38] sm:$0xff]
  %v45 = vld [vmem:[%s1 + $0x40] sm:$0xff]
  %v46 = vld [vmem:[%s1 + $0x48] sm:$0xff]
  %v47 = vld [vmem:[%s1 + $0x50] sm:$0xff]
  %v48 = vld [vmem:[%s1 + $0x58] sm:$0xff]
  %v49 = vld [vmem:[%s1 + $0x60] sm:$0xff]
  %v50 = vld [vmem:[%s1 + $0x68] sm:$0xff]
  %v51 = vld [vmem:[%s1 + $0x70] sm:$0xff]
  %v52 = vld [vmem:[%s1 + $0x78] sm:$0xff]
  %v53 = vld [vmem:[%s2] sm:$0x1]
  %v55 = vlaneseq
  %v56 = vshrl.u32 %v55, 7
  %v57 = vsub.s32 0, %v56
  %v58 = vrot.slane %v53, %v57
  %60 = vmatprep.subr.mxu0 0.0
  %61 = vmatpush1.msra.mxu0 %v52
  %62 = vmatprep.subr.mxu0 0.0
  %63 = vmatpush1.msra.mxu0 %v51
  %64 = vmatprep.subr.mxu0 0.0
  %65 = vmatpush1.msra.mxu0 %v50
  %66 = vmatprep.subr.mxu0 0.0
  %67 = vmatpush1.msra.mxu0 %v49
  %68 = vmatprep.subr.mxu0 0.0
  %69 = vmatpush1.msra.mxu0 %v48
  %70 = vmatprep.subr.mxu0 0.0
  %71 = vmatpush1.msra.mxu0 %v47
  %72 = vmatprep.subr.mxu0 0.0
  %73 = vmatpush1.msra.mxu0 %v46
  %74 = vmatprep.subr.mxu0 0.0
  %75 = vmatpush1.msra.mxu0 %v45
  %76 = vmatprep.subr.mxu0 0.0
  %77 = vmatpush1.msra.mxu0 %v44
  %78 = vmatprep.subr.mxu0 0.0
  %79 = vmatpush1.msra.mxu0 %v43
  %80 = vmatprep.subr.mxu0 0.0
  %81 = vmatpush1.msra.mxu0 %v42
  %82 = vmatprep.subr.mxu0 0.0
  %83 = vmatpush1.msra.mxu0 %v41
  %84 = vmatprep.subr.mxu0 0.0
  %85 = vmatpush1.msra.mxu0 %v40
  %86 = vmatprep.subr.mxu0 0.0
  %87 = vmatpush1.msra.mxu0 %v39
  %88 = vmatprep.subr.mxu0 0.0
  %89 = vmatpush1.msra.mxu0 %v38
  %90 = vmatprep.subr.mxu0 0.0
  %91 = vmatpush1.msra.mxu0 %v37
  %92 = vmatprep.subr.mxu0 0.0
  %93 = vmatpush2.msra.mxu0 0.0
  %94 = vmatprep.subr.mxu0 0.0
  %95 = vmatpush2.msra.mxu0 0.0
  %96 = vmatprep.subr.mxu0 0.0
  %97 = vmatpush2.msra.mxu0 0.0
  %98 = vmatprep.subr.mxu0 0.0
  %99 = vmatpush2.msra.mxu0 0.0
  %100 = vmatprep.subr.mxu0 0.0
  %101 = vmatpush2.msra.mxu0 0.0
  %102 = vmatprep.subr.mxu0 0.0
  %103 = vmatpush2.msra.mxu0 0.0
  %104 = vmatprep.subr.mxu0 0.0
  %105 = vmatpush2.msra.mxu0 0.0
  %106 = vmatprep.subr.mxu0 0.0
  %107 = vmatpush2.msra.mxu0 0.0
  %108 = vmatprep.subr.mxu0 0.0
  %109 = vmatpush2.msra.mxu0 0.0
  %110 = vmatprep.subr.mxu0 0.0
  %111 = vmatpush2.msra.mxu0 0.0
  %112 = vmatprep.subr.mxu0 0.0
  %113 = vmatpush2.msra.mxu0 0.0
  %114 = vmatprep.subr.mxu0 0.0
  %115 = vmatpush2.msra.mxu0 0.0
  %116 = vmatprep.subr.mxu0 0.0
  %117 = vmatpush2.msra.mxu0 0.0
  %118 = vmatprep.subr.mxu0 0.0
  %119 = vmatpush2.msra.mxu0 0.0
  %120 = vmatprep.subr.mxu0 0.0
  %121 = vmatpush2.msra.mxu0 0.0
  %122 = vmatprep.subr.mxu0 0.0
  %123 = vmatpush2.msra.mxu0 0.0
  %124 = vmatprep.mubr.f32.mxu0 0.0
  %125 = vmatmul.mubr.f32.gmra.mxu0 %v36
  %v126 = vpop.f32.mrf.mxu0
  %v127 = vadd.f32 %v58, %v126
  %v128 = vpop.f32.mrf.mxu0
  %129 = vdwg.mxu0
  %v130 = vmax.f32 %v127, 0.0
  %131 = vst [vmem:[%s6] sm:$0xff] %v130
  %v132 = vld [vmem:[%s3] sm:$0xff]
  %v133 = vmul.f32 %v132, %v132
  %134 = vadd.xlane.f32.xlu0 %v133
  %v135 = vpop.xlane.xlu0 %134
  %v136 = vrsqrt.pop %v135
  %v137 = vmul.f32 %v135, %v136
  %vm138 = vcmp.eq.f32.partialorder %v135, inf
  %v139 = vsel %vm138, %v135, %v137
  %vm140 = vcmp.eq.f32.partialorder %v135, 0.0
  %v141 = vand.u32 %v135, 2147483648
  %v142 = vsel %vm140, %v141, %v139
  %v143 = vadd.f32 %v142, 1e-06
  %v144 = vrcp.pop %v143
  %v145 = vmul.f32 %v132, %v144
  %v146 = vld [vmem:[%s4] sm:$0xff]
  %v147 = vld [vmem:[%s4 + $0x8] sm:$0xff]
  %v148 = vld [vmem:[%s4 + $0x10] sm:$0xff]
  %v149 = vld [vmem:[%s4 + $0x18] sm:$0xff]
  %v150 = vld [vmem:[%s4 + $0x20] sm:$0xff]
  %v151 = vld [vmem:[%s4 + $0x28] sm:$0xff]
  %v152 = vld [vmem:[%s4 + $0x30] sm:$0xff]
  %v153 = vld [vmem:[%s4 + $0x38] sm:$0xff]
  %v154 = vld [vmem:[%s4 + $0x40] sm:$0xff]
  %v155 = vld [vmem:[%s4 + $0x48] sm:$0xff]
  %v156 = vld [vmem:[%s4 + $0x50] sm:$0xff]
  %v157 = vld [vmem:[%s4 + $0x58] sm:$0xff]
  %v158 = vld [vmem:[%s4 + $0x60] sm:$0xff]
  %v159 = vld [vmem:[%s4 + $0x68] sm:$0xff]
  %v160 = vld [vmem:[%s4 + $0x70] sm:$0xff]
  %v161 = vld [vmem:[%s4 + $0x78] sm:$0xff]
  %v162 = vld [vmem:[%s5] sm:$0x1]
  %v164 = vlaneseq
  %v165 = vshrl.u32 %v164, 7
  %v166 = vsub.s32 0, %v165
  %v167 = vrot.slane %v162, %v166
  %169 = vmatprep.subr.mxu0 0.0
  %170 = vmatpush1.msra.mxu0 %v161
  %171 = vmatprep.subr.mxu0 0.0
  %172 = vmatpush1.msra.mxu0 %v160
  %173 = vmatprep.subr.mxu0 0.0
  %174 = vmatpush1.msra.mxu0 %v159
  %175 = vmatprep.subr.mxu0 0.0
  %176 = vmatpush1.msra.mxu0 %v158
  %177 = vmatprep.subr.mxu0 0.0
  %178 = vmatpush1.msra.mxu0 %v157
  %179 = vmatprep.subr.mxu0 0.0
  %180 = vmatpush1.msra.mxu0 %v156
  %181 = vmatprep.subr.mxu0 0.0
  %182 = vmatpush1.msra.mxu0 %v155
  %183 = vmatprep.subr.mxu0 0.0
  %184 = vmatpush1.msra.mxu0 %v154
  %185 = vmatprep.subr.mxu0 0.0
  %186 = vmatpush1.msra.mxu0 %v153
  %187 = vmatprep.subr.mxu0 0.0
  %188 = vmatpush1.msra.mxu0 %v152
  %189 = vmatprep.subr.mxu0 0.0
  %190 = vmatpush1.msra.mxu0 %v151
  %191 = vmatprep.subr.mxu0 0.0
  %192 = vmatpush1.msra.mxu0 %v150
  %193 = vmatprep.subr.mxu0 0.0
  %194 = vmatpush1.msra.mxu0 %v149
  %195 = vmatprep.subr.mxu0 0.0
  %196 = vmatpush1.msra.mxu0 %v148
  %197 = vmatprep.subr.mxu0 0.0
  %198 = vmatpush1.msra.mxu0 %v147
  %199 = vmatprep.subr.mxu0 0.0
  %200 = vmatpush1.msra.mxu0 %v146
  %201 = vmatprep.subr.mxu0 0.0
  %202 = vmatpush2.msra.mxu0 0.0
  %203 = vmatprep.subr.mxu0 0.0
  %204 = vmatpush2.msra.mxu0 0.0
  %205 = vmatprep.subr.mxu0 0.0
  %206 = vmatpush2.msra.mxu0 0.0
  %207 = vmatprep.subr.mxu0 0.0
  %208 = vmatpush2.msra.mxu0 0.0
  %209 = vmatprep.subr.mxu0 0.0
  %210 = vmatpush2.msra.mxu0 0.0
  %211 = vmatprep.subr.mxu0 0.0
  %212 = vmatpush2.msra.mxu0 0.0
  %213 = vmatprep.subr.mxu0 0.0
  %214 = vmatpush2.msra.mxu0 0.0
  %215 = vmatprep.subr.mxu0 0.0
  %216 = vmatpush2.msra.mxu0 0.0
  %217 = vmatprep.subr.mxu0 0.0
  %218 = vmatpush2.msra.mxu0 0.0
  %219 = vmatprep.subr.mxu0 0.0
  %220 = vmatpush2.msra.mxu0 0.0
  %221 = vmatprep.subr.mxu0 0.0
  %222 = vmatpush2.msra.mxu0 0.0
  %223 = vmatprep.subr.mxu0 0.0
  %224 = vmatpush2.msra.mxu0 0.0
  %225 = vmatprep.subr.mxu0 0.0
  %226 = vmatpush2.msra.mxu0 0.0
  %227 = vmatprep.subr.mxu0 0.0
  %228 = vmatpush2.msra.mxu0 0.0
  %229 = vmatprep.subr.mxu0 0.0
  %230 = vmatpush2.msra.mxu0 0.0
  %231 = vmatprep.subr.mxu0 0.0
  %232 = vmatpush2.msra.mxu0 0.0
  %233 = vmatprep.mubr.f32.mxu0 0.0
  %234 = vmatmul.mubr.f32.gmra.mxu0 %v145
  %v235 = vpop.f32.mrf.mxu0
  %v236 = vadd.f32 %v167, %v235
  %v237 = vpop.f32.mrf.mxu0
  %238 = vdwg.mxu0
  %v239 = vmax.f32 %v236, 0.0
  %240 = vst [vmem:[%s6 + $0x8] sm:$0xff] %v239
  // Predicated region
  $region26: #{rnet_forward.1} parent=0 // pred_check
    _
  $region27: #{rnet_forward.1} parent=0 // pred_check_branch
    %242 = sbr.rel (0) target = $region29
  $region28: #{rnet_forward.1} parent=0 // pred_region
    _
  $region29: #{rnet_forward.1} parent=0 // pred_fallthru
    _
  // Predicated region
  $region30: #{rnet_forward.1} parent=0 // pred_check
    _
  $region31: #{rnet_forward.1} parent=0 // pred_check_branch
    %244 = sbr.rel (0) target = $region33
  $region32: #{rnet_forward.1} parent=0 // pred_region
    _
  $region33: #{rnet_forward.1} parent=0 // pred_fallthru
    _

</llo_original>
